<compile_context>
chip_gen: v7x
topology: tpu7x:2x2x1
jax: 0.10.0
libtpu: 0.0.40
codegen_flags: <defaults>
</compile_context>

<pallas_src>
import jax
import jax.numpy as jnp
from jax.experimental import pallas as pl
from jax.experimental.pallas import tpu as pltpu


# ----------------------------------------------------------------------------
# Pallas kernel
# ----------------------------------------------------------------------------
def _clip_kernel(x_ref, o_ref):
    """Elementwise clamp to [1, 64]; NaN propagates (matches PyTorch semantics)."""
    x = x_ref[...]
    lo = jnp.asarray(1, x.dtype)
    hi = jnp.asarray(64, x.dtype)
    o_ref[...] = jnp.minimum(jnp.maximum(x, lo), hi)


# ----------------------------------------------------------------------------
# Wrapper
# ----------------------------------------------------------------------------
def _pick_lane_width(total, max_cols=2048):
    """Largest multiple of 128 (<= max_cols) that divides `total` exactly.

    Prefers widths that leave at least 8 rows (canonical sublane-aligned
    layout); returns None if no multiple of 128 divides `total`.
    """
    best = None
    best_rowful = None
    cols = 128
    while cols <= max_cols and cols <= total:
        if total % cols == 0:
            best = cols
            if total // cols >= 8:
                best_rowful = cols
        cols += 128
    return best_rowful if best_rowful is not None else best


def clip_data(x, *, target_block_bytes=2 * 1024 * 1024):
    """ClipData.forward for an arbitrary-shaped array (forward pass only)."""
    orig_shape = x.shape
    dtype = x.dtype
    total = x.size
    if total == 0:
        return x

    cols = _pick_lane_width(total)
    if cols is None:
        # Shapes that cannot be tiled lane-dense without padding: the fused
        # XLA clamp is a single roofline elementwise kernel with no extra
        # copies, so never pay a pad/slice penalty.
        return jnp.minimum(jnp.maximum(x, jnp.asarray(1, dtype)),
                           jnp.asarray(64, dtype))

    rows = total // cols
    itemsize = jnp.dtype(dtype).itemsize

    if rows < 16:
        # Single (full-height) block; block dim equals array dim, so the
        # (8,128) rule is satisfied even when rows < 8.
        tm = rows
    else:
        # Byte-budget row tile (8-aligned), capped at the array height.
        budget_rows = max(8, (target_block_bytes // (cols * itemsize)) // 8 * 8)
        tm = max(8, min(budget_rows, (rows // 8) * 8))
        # Keep at least 2 row blocks so v7x's two TensorCores both get work.
        if pl.cdiv(rows, tm) < 2:
            tm = max(8, ((rows // 2) // 8) * 8)

    grid = pl.cdiv(rows, tm)
    xf = x.reshape(rows, cols)   # metadata-only reshape for contiguous input

    out = pl.pallas_call(
        _clip_kernel,
        out_shape=jax.ShapeDtypeStruct((rows, cols), dtype),
        grid=(grid,),
        in_specs=[pl.BlockSpec((tm, cols), lambda i: (i, 0))],
        out_specs=pl.BlockSpec((tm, cols), lambda i: (i, 0)),
        compiler_params=pltpu.CompilerParams(
            dimension_semantics=("parallel",)),
    )(xf)

    return out.reshape(orig_shape)


# ----------------------------------------------------------------------------
if __name__ == "__main__":
    key = jax.random.PRNGKey(0)
    # NCHW-like small input; scale so values land below 1 and above 64,
    # exercising both clip branches.
    x = 80.0 * jax.random.normal(key, (2, 4, 16, 16), jnp.float32)

    fwd = jax.jit(clip_data)
    out = jax.block_until_ready(fwd(x))

    # Reference: exact PyTorch ClipData.forward semantics.
    ref = jnp.where(x < 1.0, 1.0, x)
    ref = jnp.where(x > 64.0, 64.0, ref)

    assert out.shape == x.shape, out.shape
    assert out.dtype == x.dtype, out.dtype
    assert bool(jnp.all(jnp.isfinite(out)))
    assert bool(jnp.all((out >= 1.0) & (out <= 64.0)))
    assert bool(jnp.all(out == ref))
    # Make sure both branches were actually hit by the test data.
    assert bool(jnp.any(x < 1.0)) and bool(jnp.any(x > 64.0))

    print("KERNEL_OK")
</pallas_src>

<mosaic_0001>
module attributes {stable_mosaic.version = 11 : i64} {
  func.func @_clip_kernel(%arg0: i32, %arg1: memref<8x256xf32, #tpu.memory_space<vmem>>, %arg2: memref<8x256xf32, #tpu.memory_space<vmem>>) attributes {dimension_semantics = [#tpu.dimension_semantics<parallel>], iteration_bounds = array<i64: 1>, scalar_prefetch = 0 : i64, scratch_operands = 0 : i64, tpu.core_type = #tpu.core_type<tc>, window_params = [{transform_indices = @transform_0, window_bounds = array<i64: 8, 256>}, {transform_indices = @transform_1, window_bounds = array<i64: 8, 256>}]} {
    %c0 = arith.constant 0 : index
    %c0_0 = arith.constant 0 : index
    %0 = vector.load %arg1[%c0, %c0_0] : memref<8x256xf32, #tpu.memory_space<vmem>>, vector<8x256xf32>
    %cst = arith.constant 1.000000e+00 : f32
    %1 = vector.broadcast %cst : f32 to vector<8x256xf32>
    %2 = arith.maximumf %0, %1 : vector<8x256xf32>
    %cst_1 = arith.constant 6.400000e+01 : f32
    %3 = vector.broadcast %cst_1 : f32 to vector<8x256xf32>
    %4 = arith.minimumf %2, %3 : vector<8x256xf32>
    %c0_2 = arith.constant 0 : index
    %c0_3 = arith.constant 0 : index
    %5 = vector.load %arg2[%c0_2, %c0_3] : memref<8x256xf32, #tpu.memory_space<vmem>>, vector<8x256xf32>
    tpu.vector_store %arg2[%c0_2, %c0_3], %4 {strides = array<i32>} : memref<8x256xf32, #tpu.memory_space<vmem>>, vector<8x256xf32>,
    return
  }
  func.func @transform_0(%arg0: i32) -> (i32, i32) {
    %c0_i32 = arith.constant 0 : i32
    %c0_i32_0 = arith.constant 0 : i32
    return %arg0, %c0_i32 : i32, i32
  }
  func.func @transform_1(%arg0: i32) -> (i32, i32) {
    %c0_i32 = arith.constant 0 : i32
    %c0_i32_0 = arith.constant 0 : i32
    return %arg0, %c0_i32 : i32, i32
  }
}

</mosaic_0001>

<llo_original>
// kernel: clip_data.1
$region0: #{clip_data.1}
  #allocation0 [shape = 'u32[]', space=smem, size = 0x4, offset = 0x4, fixed_abs, tag = 'smem constant byte address 0x4 - core index']
  #allocation1 [shape = 'u32[144,128]{1,0:T(1,128)}', space=vmem, size = 0x12000, scoped, tag = 'internal scratch']
  %s0 = inlined_call_operand.vmem [shape: f32[8,256], index: 0, kind: input, shape index: {}]
  %s1 = inlined_call_operand.vmem [shape: f32[8,256], index: 1, kind: output, shape index: {}]
  %s2 = sld [smem:[#allocation0]]
  $region14: #{clip_data.1} parent=0
    _
  %s4 = ssub.s32 1, %s2
  %s5 = scalar_select 0, %s4, %s2
  // Predicated region
  $region2: #{clip_data.1} parent=0 // pred_check
    _
  $region3: #{clip_data.1} parent=0 // pred_check_branch
    %7 = sbr.rel (0) target = $region5
  $region4: #{clip_data.1} parent=0 // pred_region
    _
  $region5: #{clip_data.1} parent=0 // pred_fallthru
    _
  %v8 = vld [vmem:[%s0] sm:$0xff]
  %v9 = vld [vmem:[%s0 + $0x8] sm:$0xff]
  %v10 = vmax.f32 %v8, 1.0
  %v11 = vmax.f32 %v9, 1.0
  %v12 = vmin.f32 %v10, 64.0
  %v13 = vmin.f32 %v11, 64.0
  %14 = vst [vmem:[%s1] sm:$0xff] %v12
  %15 = vst [vmem:[%s1 + $0x8] sm:$0xff] %v13
  // Predicated region
  $region6: #{clip_data.1} parent=0 // pred_check
    _
  $region7: #{clip_data.1} parent=0 // pred_check_branch
    %17 = sbr.rel (0) target = $region9
  $region8: #{clip_data.1} parent=0 // pred_region
    _
  $region9: #{clip_data.1} parent=0 // pred_fallthru
    _
  // Predicated region
  $region10: #{clip_data.1} parent=0 // pred_check
    _
  $region11: #{clip_data.1} parent=0 // pred_check_branch
    %19 = sbr.rel (0) target = $region13
  $region12: #{clip_data.1} parent=0 // pred_region
    _
  $region13: #{clip_data.1} parent=0 // pred_fallthru
    _

</llo_original>
